<compile_context>
chip_gen: v6e
topology: v6e:2x2x1
jax: 0.10.0
libtpu: 0.0.40
codegen_flags: <defaults>
</compile_context>

<pallas_src>
import jax
import jax.numpy as jnp
from jax.experimental import pallas as pl
from jax.experimental.pallas import tpu as pltpu


def fused_sa_gc_kernel(x_ref, m_ref, shift_ref, o_ref):
    """One lane-dense MXU matmul + fused epilogue.

    x_ref:     (tb, V*C)   compute dtype -- frames, (vertex, channel) flattened
    m_ref:     (V*C, V*O)  compute dtype -- fused  s[o] * sum_h A_h (x) W_h  operator
    shift_ref: (1, V*O)    f32           -- summed conv biases * s + BN shift, tiled over V
    o_ref:     (tb, V*O)   compute dtype -- output tile (narrow writeback)
    """
    x = x_ref[...]
    acc = jnp.dot(x, m_ref[...], preferred_element_type=jnp.float32)
    # fused shift (conv biases + eval-mode BN), identity residual, relu — all in f32
    y = acc + shift_ref[...] + x.astype(jnp.float32)
    o_ref[...] = jnp.maximum(y, 0.0).astype(o_ref.dtype)


def _round_up(x, m):
    return ((x + m - 1) // m) * m


def _pick_tb(nt, cap=1024):
    """Row tile: as large as allowed (amortize per-step pipeline overhead), a multiple of
    128 (MXU rows) when the problem is big enough, otherwise a multiple of 16 (bf16 sublane
    packing).  Prefers >= 2 grid steps so both v7x TensorCores get work.  NT is padded up to
    a multiple of tb in the wrapper, so tb need NOT divide NT."""
    for tb in (1024, 512, 256, 128):
        if tb <= cap and nt >= 2 * tb:
            return tb
    if nt >= 32:                             # small problem: two sublane-aligned blocks
        return _round_up(pl.cdiv(nt, 2), 16)
    return max(16, _round_up(nt, 16))        # tiny problem: single block


def aff_with_custom_gcn(x, A, W, b, gamma, beta, run_mean, run_var,
                        eps=1e-5, tb=None, compute_dtype=jnp.bfloat16,
                        out_dtype=None):
    """x: (N, C, T, V) float32 (PyTorch NCHW).  Returns (N, O, T, V) in out_dtype
    (defaults to compute_dtype — bf16 writeback halves the kernel's dominant HBM cost)."""
    N, C, T, V = x.shape
    H, O, Ci = W.shape
    assert Ci == C and O == C, "down-path is identity only when in==out channels"
    if out_dtype is None:
        out_dtype = compute_dtype

    NT = N * T
    VC = V * C
    VO = V * O

    if tb is None:
        tb = _pick_tb(NT)
    grid = pl.cdiv(NT, tb)
    NT_pad = grid * tb

    # Layout: (N, C, T, V) -> (N*T, V*C): channels fastest, 512-wide lane-dense slab.
    feat = jnp.transpose(x, (0, 2, 3, 1)).reshape(NT, VC).astype(compute_dtype)
    if NT_pad != NT:
        # Zero-pad rows; the matmul/epilogue output on pad rows is discarded below.
        feat = jnp.pad(feat, ((0, NT_pad - NT), (0, 0)))

    # Pre-fuse graph aggregation + 1x1 conv over all heads + eval-mode BN scale into one
    # operator (constant fold in the wrapper, not a per-activation pre-scale):
    #   M[(u, c), (v, o)] = s[o] * sum_h A[h, v, u] * W[h, o, c]
    #   out[b, (v, o)]    = sum_{u, c} x[b, (u, c)] * M[(u, c), (v, o)] + shift[o]
    s = gamma / jnp.sqrt(run_var + eps)                               # (O,)
    M = jnp.einsum('hvu,hoc,o->ucvo',
                   A.astype(jnp.float32), W.astype(jnp.float32), s.astype(jnp.float32))
    M = M.reshape(VC, VO).astype(compute_dtype)

    # Summed conv biases + eval-mode BatchNorm shift, tiled over V (lane-dense (1, V*O)).
    b_tot = jnp.sum(b, axis=0)                                        # (O,)
    shift = b_tot * s + beta - run_mean * s                           # (O,)
    shift_vo = jnp.broadcast_to(shift[None, :], (V, O)).reshape(1, VO).astype(jnp.float32)

    # VMEM budget: count default double-buffering of EVERY operand (incl. the invariant M)
    # plus compiler scratch headroom; stays well inside v7x's 64 MiB even at tb=1024.
    in_b = jnp.dtype(compute_dtype).itemsize
    out_b = jnp.dtype(out_dtype).itemsize
    vmem_bytes = (2 * tb * VC * in_b           # double-buffered input tiles
                  + 2 * tb * VO * out_b        # double-buffered output tiles
                  + 2 * VC * VO * in_b         # fused operator (double-buffered by default)
                  + 2 * VO * 4                 # shift vector
                  + (4 << 20))                 # compiler scratch headroom
    vmem_bytes = min(int(vmem_bytes), 48 << 20)

    out = pl.pallas_call(
        fused_sa_gc_kernel,
        out_shape=jax.ShapeDtypeStruct((NT_pad, VO), out_dtype),
        grid_spec=pltpu.PrefetchScalarGridSpec(
            num_scalar_prefetch=0,
            grid=(grid,),
            in_specs=[
                pl.BlockSpec((tb, VC), lambda i: (i, 0)),
                pl.BlockSpec((VC, VO), lambda i: (0, 0)),
                pl.BlockSpec((1, VO), lambda i: (0, 0)),
            ],
            out_specs=pl.BlockSpec((tb, VO), lambda i: (i, 0)),
        ),
        compiler_params=pltpu.CompilerParams(
            dimension_semantics=("parallel",),
            vmem_limit_bytes=vmem_bytes),
    )(feat, M, shift_vo)

    out = out[:NT]                                     # drop pad rows
    return jnp.transpose(out.reshape(N, T, V, O), (0, 3, 1, 2))


def reference(x, A, W, b, gamma, beta, run_mean, run_var, eps=1e-5):
    """Pure-JAX reference mirroring the PyTorch SA_GC forward (eval-mode BN)."""
    N, C, T, V = x.shape
    H, O, _ = W.shape
    feat = jnp.transpose(x, (0, 2, 3, 1)).reshape(N * T, V, C)
    out = None
    for h in range(H):
        z = jnp.einsum('vu,buc->bvc', A[h], feat)
        y = jnp.einsum('bvc,oc->bvo', z, W[h]) + b[h]
        out = y if out is None else out + y
    out = (out - run_mean) / jnp.sqrt(run_var + eps) * gamma + beta
    out = out + feat                      # identity down-path residual
    out = jnp.maximum(out, 0.0)           # SA_GC relu
    out = jnp.maximum(out, 0.0)           # AFFWithCustomGCN relu (idempotent)
    return jnp.transpose(out.reshape(N, T, V, O), (0, 3, 1, 2))


if __name__ == "__main__":
    # small shapes consistent with the module: channels=gcn_channels=32, 3 heads
    N, C, T, V, H = 2, 32, 8, 16, 3

    key = jax.random.PRNGKey(0)
    kx, ka, kw, kb = jax.random.split(key, 4)

    x = jax.random.normal(kx, (N, C, T, V), dtype=jnp.float32)
    A = jax.random.normal(ka, (H, V, V), dtype=jnp.float32) * 0.1   # shared topology
    W = jax.random.normal(kw, (H, C, C), dtype=jnp.float32) * 0.1   # 1x1 conv weights
    b = jax.random.normal(kb, (H, C), dtype=jnp.float32) * 0.01     # 1x1 conv biases

    # BatchNorm2d in eval mode with default running stats; deterministic affine.
    gamma = jnp.ones((C,), jnp.float32)
    beta = jnp.zeros((C,), jnp.float32)
    run_mean = jnp.zeros((C,), jnp.float32)
    run_var = jnp.ones((C,), jnp.float32)

    ref = reference(x, A, W, b, gamma, beta, run_mean, run_var)

    # f32 in / f32 out path: tight tolerance check against the per-head reference.
    out_f32 = aff_with_custom_gcn(x, A, W, b, gamma, beta, run_mean, run_var,
                                  compute_dtype=jnp.float32, out_dtype=jnp.float32)
    out_f32 = jax.block_until_ready(out_f32)
    assert out_f32.shape == (N, C, T, V)
    assert jnp.allclose(out_f32, ref, atol=1e-4, rtol=1e-4), "f32 mismatch vs reference"

    # Default fast path: bf16 matmul inputs AND bf16 writeback (≈1/3 of the f32-out HBM
    # traffic); f32 accumulation/epilogue in-kernel.  Loose tolerance.
    out_bf16 = aff_with_custom_gcn(x, A, W, b, gamma, beta, run_mean, run_var)
    out_bf16 = jax.block_until_ready(out_bf16)
    assert out_bf16.shape == (N, C, T, V)
    assert jnp.allclose(out_bf16.astype(jnp.float32), ref,
                        atol=5e-2, rtol=5e-2), "bf16 mismatch vs reference"

    print("KERNEL_OK")
</pallas_src>

<mosaic_0001>
module attributes {stable_mosaic.version = 11 : i64} {
  func.func @fused_sa_gc_kernel(%arg0: i32, %arg1: memref<16x512xf32, #tpu.memory_space<vmem>>, %arg2: memref<512x512xf32, #tpu.memory_space<vmem>>, %arg3: memref<1x512xf32, #tpu.memory_space<vmem>>, %arg4: memref<16x512xf32, #tpu.memory_space<vmem>>) attributes {dimension_semantics = [#tpu.dimension_semantics<parallel>], iteration_bounds = array<i64: 1>, scalar_prefetch = 0 : i64, scratch_operands = 0 : i64, tpu.core_type = #tpu.core_type<tc>, window_params = [{transform_indices = @transform_0, window_bounds = array<i64: 16, 512>}, {pipeline_mode = #tpu.pipeline_mode<synchronous>, transform_indices = @transform_1, window_bounds = array<i64: 512, 512>}, {pipeline_mode = #tpu.pipeline_mode<synchronous>, transform_indices = @transform_2, window_bounds = array<i64: 1, 512>}, {transform_indices = @transform_3, window_bounds = array<i64: 16, 512>}]} {
    %c0 = arith.constant 0 : index
    %c0_0 = arith.constant 0 : index
    %0 = vector.load %arg1[%c0, %c0_0] : memref<16x512xf32, #tpu.memory_space<vmem>>, vector<16x512xf32>
    %c0_1 = arith.constant 0 : index
    %c0_2 = arith.constant 0 : index
    %1 = vector.load %arg2[%c0_1, %c0_2] : memref<512x512xf32, #tpu.memory_space<vmem>>, vector<512x512xf32>
    %cst = arith.constant dense<0.000000e+00> : vector<16x512xf32>
    %2 = tpu.matmul %0, %1, %cst {dimension_numbers = #tpu.dot_dimension_numbers<[1], [0], [0], [1], [0, 0, 1, 1], [], []>} : vector<16x512xf32>, vector<512x512xf32>, vector<16x512xf32> -> vector<16x512xf32>
    %c0_3 = arith.constant 0 : index
    %c0_4 = arith.constant 0 : index
    %3 = vector.load %arg3[%c0_3, %c0_4] : memref<1x512xf32, #tpu.memory_space<vmem>>, vector<1x512xf32>
    %4 = vector.broadcast %3 : vector<1x512xf32> to vector<16x512xf32>
    %5 = arith.addf %2, %4 : vector<16x512xf32>
    %6 = arith.addf %5, %0 : vector<16x512xf32>
    %cst_5 = arith.constant 0.000000e+00 : f32
    %7 = vector.broadcast %cst_5 : f32 to vector<16x512xf32>
    %8 = arith.maximumf %6, %7 : vector<16x512xf32>
    %c0_6 = arith.constant 0 : index
    %c0_7 = arith.constant 0 : index
    %9 = vector.load %arg4[%c0_6, %c0_7] : memref<16x512xf32, #tpu.memory_space<vmem>>, vector<16x512xf32>
    tpu.vector_store %arg4[%c0_6, %c0_7], %8 {strides = array<i32>} : memref<16x512xf32, #tpu.memory_space<vmem>>, vector<16x512xf32>,
    return
  }
  func.func @transform_0(%arg0: i32) -> (i32, i32) {
    %c0_i32 = arith.constant 0 : i32
    %c0_i32_0 = arith.constant 0 : i32
    return %arg0, %c0_i32 : i32, i32
  }
  func.func @transform_1(%arg0: i32) -> (i32, i32) {
    %c0_i32 = arith.constant 0 : i32
    %c0_i32_0 = arith.constant 0 : i32
    %c0_i32_1 = arith.constant 0 : i32
    return %c0_i32, %c0_i32_0 : i32, i32
  }
  func.func @transform_2(%arg0: i32) -> (i32, i32) {
    %c0_i32 = arith.constant 0 : i32
    %c0_i32_0 = arith.constant 0 : i32
    %c0_i32_1 = arith.constant 0 : i32
    return %c0_i32, %c0_i32_0 : i32, i32
  }
  func.func @transform_3(%arg0: i32) -> (i32, i32) {
    %c0_i32 = arith.constant 0 : i32
    %c0_i32_0 = arith.constant 0 : i32
    return %arg0, %c0_i32 : i32, i32
  }
}

</mosaic_0001>

<llo_original>
// kernel: tpu_custom_call.1
$region0: #{tpu_custom_call.1}
  #allocation0 [shape = 'u32[]', space=smem, size = 0x4, offset = 0x4, fixed_abs, tag = 'smem constant byte address 0x4 - core index']
  #allocation1 [shape = 'u32[144,128]{1,0:T(1,128)}', space=vmem, size = 0x12000, scoped, tag = 'internal scratch']
  %s0 = inlined_call_operand.hbm [shape: f32[16,512], index: 0, kind: input, shape index: {}]
  %s1 = inlined_call_operand.hbm [shape: f32[512,512], index: 1, kind: input, shape index: {}]
  %s2 = inlined_call_operand.hbm [shape: f32[1,512], index: 2, kind: input, shape index: {}]
  %s3 = inlined_call_operand.hbm [shape: f32[16,512], index: 3, kind: output, shape index: {}]
  %s4 = sld [smem:[#allocation0]]
  $region34: #{tpu_custom_call.1} parent=0
    _
  %s6 = ssub.s32 1, %s4
  %s7 = scalar_select 0, %s6, %s4
  $region1: #{tpu_custom_call.1} parent=0
    #allocation2 [shape = 'u8[32768]{0}', space=vmem, size = 0x8000, scoped, tag = 'input window, operand 0, single buffered']
    #allocation3 [shape = 's32[1]{0}', space=sflag, size = 0x4, scoped, tag = 'scoped memory for tpu_custom_call.1']
    #allocation4 [shape = 's32[1]{0}', space=sflag, size = 0x4, scoped, tag = 'scoped memory for tpu_custom_call.1']
    #allocation5 [shape = 'u8[1048576]{0}', space=vmem, size = 0x100000, scoped, tag = 'input window, operand 1, single buffered']
    #allocation6 [shape = 's32[1]{0}', space=sflag, size = 0x4, scoped, tag = 'scoped memory for tpu_custom_call.1']
    #allocation7 [shape = 'u8[2048]{0}', space=vmem, size = 0x800, scoped, tag = 'input window, operand 2, single buffered']
    #allocation8 [shape = 'u8[32768]{0}', space=vmem, size = 0x8000, scoped, tag = 'output window, operand 0, single buffered']
    %8 = vsyncpa [#allocation3], 0
    %9 = vsyncpa [#allocation6], 0
    %10 = vsyncpa [#allocation4], 0
    // Predicated region
    $region2: #{tpu_custom_call.1} parent=1 // pred_check
      _
    $region3: #{tpu_custom_call.1} parent=1 // pred_check_branch
      %12 = sbr.rel (0) target = $region5
    $region4: #{tpu_custom_call.1} parent=1 // pred_region
      %s14 = ssub.s32 1024, 1024
      %15 = vsyncadd [#allocation3], %s14
      %s16 = sshll.u32 [#allocation2], 4
      %s17 = int_to_ptr.vmem [resolvable:$true] %s16
      %22 = dma.hbm_to_vmem [thread:$0]  %s0, 1024, %s17, [#allocation3], 512, 512, 32
    $region5: #{tpu_custom_call.1} parent=1 // pred_fallthru
      _
    // Predicated region
    $region6: #{tpu_custom_call.1} parent=1 // pred_check
      _
    $region7: #{tpu_custom_call.1} parent=1 // pred_check_branch
      %24 = sbr.rel (0) target = $region9
    $region8: #{tpu_custom_call.1} parent=1 // pred_region
      %s26 = ssub.s32 32768, 32768
      %27 = vsyncadd [#allocation6], %s26
      %s28 = sshll.u32 [#allocation5], 4
      %s29 = int_to_ptr.vmem [resolvable:$true] %s28
      %34 = dma.hbm_to_vmem [thread:$0]  %s1, 32768, %s29, [#allocation6], 512, 512, 32
    $region9: #{tpu_custom_call.1} parent=1 // pred_fallthru
      _
    // Predicated region
    $region10: #{tpu_custom_call.1} parent=1 // pred_check
      _
    $region11: #{tpu_custom_call.1} parent=1 // pred_check_branch
      %36 = sbr.rel (0) target = $region13
    $region12: #{tpu_custom_call.1} parent=1 // pred_region
      %s38 = ssub.s32 64, 64
      %39 = vsyncadd [#allocation6], %s38
      %s41 = sshll.u32 [#allocation7], 4
      %s42 = int_to_ptr.vmem [resolvable:$true] %s41
      %44 = dma.hbm_to_vmem [thread:$0]  %s2, 64, %s42, [#allocation6]
    $region13: #{tpu_custom_call.1} parent=1 // pred_fallthru
      _
    // Predicated region
    $region14: #{tpu_custom_call.1} parent=1 // pred_check
      _
    $region15: #{tpu_custom_call.1} parent=1 // pred_check_branch
      %46 = sbr.rel (0) target = $region17
    $region16: #{tpu_custom_call.1} parent=1 // pred_region
      %47 = dma.done [#allocation3], 1024
    $region17: #{tpu_custom_call.1} parent=1 // pred_fallthru
      _
    // Predicated region
    $region18: #{tpu_custom_call.1} parent=1 // pred_check
      _
    $region19: #{tpu_custom_call.1} parent=1 // pred_check_branch
      %49 = sbr.rel (0) target = $region21
    $region20: #{tpu_custom_call.1} parent=1 // pred_region
      %50 = dma.done [#allocation6], 32768
    $region21: #{tpu_custom_call.1} parent=1 // pred_fallthru
      _
    // Predicated region
    $region22: #{tpu_custom_call.1} parent=1 // pred_check
      _
    $region23: #{tpu_custom_call.1} parent=1 // pred_check_branch
      %52 = sbr.rel (0) target = $region25
    $region24: #{tpu_custom_call.1} parent=1 // pred_region
      %53 = dma.done [#allocation6], 64
    $region25: #{tpu_custom_call.1} parent=1 // pred_fallthru
      _
    %v54 = vld [vmem:[#allocation2] sm:$0xff]
    %v55 = vld [vmem:[#allocation2 + $0x8] sm:$0xff]
    %v56 = vld [vmem:[#allocation2 + $0x10] sm:$0xff]
    %v57 = vld [vmem:[#allocation2 + $0x18] sm:$0xff]
    %v58 = vld [vmem:[#allocation2 + $0x20] sm:$0xff]
    %v59 = vld [vmem:[#allocation2 + $0x28] sm:$0xff]
    %v60 = vld [vmem:[#allocation2 + $0x30] sm:$0xff]
    %v61 = vld [vmem:[#allocation2 + $0x38] sm:$0xff]
    %v62 = vld [vmem:[#allocation5] sm:$0xff]
    %v63 = vld [vmem:[#allocation5 + $0x8] sm:$0xff]
    %v64 = vld [vmem:[#allocation5 + $0x10] sm:$0xff]
    %v65 = vld [vmem:[#allocation5 + $0x18] sm:$0xff]
    %v66 = vld [vmem:[#allocation5 + $0x20] sm:$0xff]
    %v67 = vld [vmem:[#allocation5 + $0x28] sm:$0xff]
    %v68 = vld [vmem:[#allocation5 + $0x30] sm:$0xff]
    %v69 = vld [vmem:[#allocation5 + $0x38] sm:$0xff]
    %v70 = vld [vmem:[#allocation5 + $0x40] sm:$0xff]
    %v71 = vld [vmem:[#allocation5 + $0x48] sm:$0xff]
    %v72 = vld [vmem:[#allocation5 + $0x50] sm:$0xff]
    %v73 = vld [vmem:[#allocation5 + $0x58] sm:$0xff]
    %v74 = vld [vmem:[#allocation5 + $0x60] sm:$0xff]
    %v75 = vld [vmem:[#allocation5 + $0x68] sm:$0xff]
    %v76 = vld [vmem:[#allocation5 + $0x70] sm:$0xff]
    %v77 = vld [vmem:[#allocation5 + $0x78] sm:$0xff]
    %v78 = vld [vmem:[#allocation5 + $0x80] sm:$0xff]
    %v79 = vld [vmem:[#allocation5 + $0x88] sm:$0xff]
    %v80 = vld [vmem:[#allocation5 + $0x90] sm:$0xff]
    %v81 = vld [vmem:[#allocation5 + $0x98] sm:$0xff]
    %v82 = vld [vmem:[#allocation5 + $0xa0] sm:$0xff]
    %v83 = vld [vmem:[#allocation5 + $0xa8] sm:$0xff]
    %v84 = vld [vmem:[#allocation5 + $0xb0] sm:$0xff]
    %v85 = vld [vmem:[#allocation5 + $0xb8] sm:$0xff]
    %v86 = vld [vmem:[#allocation5 + $0xc0] sm:$0xff]
    %v87 = vld [vmem:[#allocation5 + $0xc8] sm:$0xff]
    %v88 = vld [vmem:[#allocation5 + $0xd0] sm:$0xff]
    %v89 = vld [vmem:[#allocation5 + $0xd8] sm:$0xff]
    %v90 = vld [vmem:[#allocation5 + $0xe0] sm:$0xff]
    %v91 = vld [vmem:[#allocation5 + $0xe8] sm:$0xff]
    %v92 = vld [vmem:[#allocation5 + $0xf0] sm:$0xff]
    %v93 = vld [vmem:[#allocation5 + $0xf8] sm:$0xff]
    %v94 = vld [vmem:[#allocation5 + $0x100] sm:$0xff]
    %v95 = vld [vmem:[#allocation5 + $0x108] sm:$0xff]
    %v96 = vld [vmem:[#allocation5 + $0x110] sm:$0xff]
    %v97 = vld [vmem:[#allocation5 + $0x118] sm:$0xff]
    %v98 = vld [vmem:[#allocation5 + $0x120] sm:$0xff]
    %v99 = vld [vmem:[#allocation5 + $0x128] sm:$0xff]
    %v100 = vld [vmem:[#allocation5 + $0x130] sm:$0xff]
    %v101 = vld [vmem:[#allocation5 + $0x138] sm:$0xff]
    %v102 = vld [vmem:[#allocation5 + $0x140] sm:$0xff]
    %v103 = vld [vmem:[#allocation5 + $0x148] sm:$0xff]
    %v104 = vld [vmem:[#allocation5 + $0x150] sm:$0xff]
    %v105 = vld [vmem:[#allocation5 + $0x158] sm:$0xff]
    %v106 = vld [vmem:[#allocation5 + $0x160] sm:$0xff]
    %v107 = vld [vmem:[#allocation5 + $0x168] sm:$0xff]
    %v108 = vld [vmem:[#allocation5 + $0x170] sm:$0xff]
    %v109 = vld [vmem:[#allocation5 + $0x178] sm:$0xff]
    %v110 = vld [vmem:[#allocation5 + $0x180] sm:$0xff]
    %v111 = vld [vmem:[#allocation5 + $0x188] sm:$0xff]
    %v112 = vld [vmem:[#allocation5 + $0x190] sm:$0xff]
    %v113 = vld [vmem:[#allocation5 + $0x198] sm:$0xff]
    %v114 = vld [vmem:[#allocation5 + $0x1a0] sm:$0xff]
    %v115 = vld [vmem:[#allocation5 + $0x1a8] sm:$0xff]
    %v116 = vld [vmem:[#allocation5 + $0x1b0] sm:$0xff]
    %v117 = vld [vmem:[#allocation5 + $0x1b8] sm:$0xff]
    %v118 = vld [vmem:[#allocation5 + $0x1c0] sm:$0xff]
    %v119 = vld [vmem:[#allocation5 + $0x1c8] sm:$0xff]
    %v120 = vld [vmem:[#allocation5 + $0x1d0] sm:$0xff]
    %v121 = vld [vmem:[#allocation5 + $0x1d8] sm:$0xff]
    %v122 = vld [vmem:[#allocation5 + $0x1e0] sm:$0xff]
    %v123 = vld [vmem:[#allocation5 + $0x1e8] sm:$0xff]
    %v124 = vld [vmem:[#allocation5 + $0x1f0] sm:$0xff]
    %v125 = vld [vmem:[#allocation5 + $0x1f8] sm:$0xff]
    %v126 = vld [vmem:[#allocation5 + $0x200] sm:$0xff]
    %v127 = vld [vmem:[#allocation5 + $0x208] sm:$0xff]
    %v128 = vld [vmem:[#allocation5 + $0x210] sm:$0xff]
    %v129 = vld [vmem:[#allocation5 + $0x218] sm:$0xff]
    %v130 = vld [vmem:[#allocation5 + $0x220] sm:$0xff]
    %v131 = vld [vmem:[#allocation5 + $0x228] sm:$0xff]
    %v132 = vld [vmem:[#allocation5 + $0x230] sm:$0xff]
    %v133 = vld [vmem:[#allocation5 + $0x238] sm:$0xff]
    %v134 = vld [vmem:[#allocation5 + $0x240] sm:$0xff]
    %v135 = vld [vmem:[#allocation5 + $0x248] sm:$0xff]
    %v136 = vld [vmem:[#allocation5 + $0x250] sm:$0xff]
    %v137 = vld [vmem:[#allocation5 + $0x258] sm:$0xff]
    %v138 = vld [vmem:[#allocation5 + $0x260] sm:$0xff]
    %v139 = vld [vmem:[#allocation5 + $0x268] sm:$0xff]
    %v140 = vld [vmem:[#allocation5 + $0x270] sm:$0xff]
    %v141 = vld [vmem:[#allocation5 + $0x278] sm:$0xff]
    %v142 = vld [vmem:[#allocation5 + $0x280] sm:$0xff]
    %v143 = vld [vmem:[#allocation5 + $0x288] sm:$0xff]
    %v144 = vld [vmem:[#allocation5 + $0x290] sm:$0xff]
    %v145 = vld [vmem:[#allocation5 + $0x298] sm:$0xff]
    %v146 = vld [vmem:[#allocation5 + $0x2a0] sm:$0xff]
    %v147 = vld [vmem:[#allocation5 + $0x2a8] sm:$0xff]
    %v148 = vld [vmem:[#allocation5 + $0x2b0] sm:$0xff]
    %v149 = vld [vmem:[#allocation5 + $0x2b8] sm:$0xff]
    %v150 = vld [vmem:[#allocation5 + $0x2c0] sm:$0xff]
    %v151 = vld [vmem:[#allocation5 + $0x2c8] sm:$0xff]
    %v152 = vld [vmem:[#allocation5 + $0x2d0] sm:$0xff]
    %v153 = vld [vmem:[#allocation5 + $0x2d8] sm:$0xff]
    %v154 = vld [vmem:[#allocation5 + $0x2e0] sm:$0xff]
    %v155 = vld [vmem:[#allocation5 + $0x2e8] sm:$0xff]
    %v156 = vld [vmem:[#allocation5 + $0x2f0] sm:$0xff]
    %v157 = vld [vmem:[#allocation5 + $0x2f8] sm:$0xff]
    %v158 = vld [vmem:[#allocation5 + $0x300] sm:$0xff]
    %v159 = vld [vmem:[#allocation5 + $0x308] sm:$0xff]
    %v160 = vld [vmem:[#allocation5 + $0x310] sm:$0xff]
    %v161 = vld [vmem:[#allocation5 + $0x318] sm:$0xff]
    %v162 = vld [vmem:[#allocation5 + $0x320] sm:$0xff]
    %v163 = vld [vmem:[#allocation5 + $0x328] sm:$0xff]
    %v164 = vld [vmem:[#allocation5 + $0x330] sm:$0xff]
    %v165 = vld [vmem:[#allocation5 + $0x338] sm:$0xff]
    %v166 = vld [vmem:[#allocation5 + $0x340] sm:$0xff]
    %v167 = vld [vmem:[#allocation5 + $0x348] sm:$0xff]
    %v168 = vld [vmem:[#allocation5 + $0x350] sm:$0xff]
    %v169 = vld [vmem:[#allocation5 + $0x358] sm:$0xff]
    %v170 = vld [vmem:[#allocation5 + $0x360] sm:$0xff]
    %v171 = vld [vmem:[#allocation5 + $0x368] sm:$0xff]
    %v172 = vld [vmem:[#allocation5 + $0x370] sm:$0xff]
    %v173 = vld [vmem:[#allocation5 + $0x378] sm:$0xff]
    %v174 = vld [vmem:[#allocation5 + $0x380] sm:$0xff]
    %v175 = vld [vmem:[#allocation5 + $0x388] sm:$0xff]
    %v176 = vld [vmem:[#allocation5 + $0x390] sm:$0xff]
    %v177 = vld [vmem:[#allocation5 + $0x398] sm:$0xff]
    %v178 = vld [vmem:[#allocation5 + $0x3a0] sm:$0xff]
    %v179 = vld [vmem:[#allocation5 + $0x3a8] sm:$0xff]
    %v180 = vld [vmem:[#allocation5 + $0x3b0] sm:$0xff]
    %v181 = vld [vmem:[#allocation5 + $0x3b8] sm:$0xff]
    %v182 = vld [vmem:[#allocation5 + $0x3c0] sm:$0xff]
    %v183 = vld [vmem:[#allocation5 + $0x3c8] sm:$0xff]
    %v184 = vld [vmem:[#allocation5 + $0x3d0] sm:$0xff]
    %v185 = vld [vmem:[#allocation5 + $0x3d8] sm:$0xff]
    %v186 = vld [vmem:[#allocation5 + $0x3e0] sm:$0xff]
    %v187 = vld [vmem:[#allocation5 + $0x3e8] sm:$0xff]
    %v188 = vld [vmem:[#allocation5 + $0x3f0] sm:$0xff]
    %v189 = vld [vmem:[#allocation5 + $0x3f8] sm:$0xff]
    %v190 = vld [vmem:[#allocation5 + $0x400] sm:$0xff]
    %v191 = vld [vmem:[#allocation5 + $0x408] sm:$0xff]
    %v192 = vld [vmem:[#allocation5 + $0x410] sm:$0xff]
    %v193 = vld [vmem:[#allocation5 + $0x418] sm:$0xff]
    %v194 = vld [vmem:[#allocation5 + $0x420] sm:$0xff]
    %v195 = vld [vmem:[#allocation5 + $0x428] sm:$0xff]
    %v196 = vld [vmem:[#allocation5 + $0x430] sm:$0xff]
    %v197 = vld [vmem:[#allocation5 + $0x438] sm:$0xff]
    %v198 = vld [vmem:[#allocation5 + $0x440] sm:$0xff]
    %v199 = vld [vmem:[#allocation5 + $0x448] sm:$0xff]
    %v200 = vld [vmem:[#allocation5 + $0x450] sm:$0xff]
    %v201 = vld [vmem:[#allocation5 + $0x458] sm:$0xff]
    %v202 = vld [vmem:[#allocation5 + $0x460] sm:$0xff]
    %v203 = vld [vmem:[#allocation5 + $0x468] sm:$0xff]
    %v204 = vld [vmem:[#allocation5 + $0x470] sm:$0xff]
    %v205 = vld [vmem:[#allocation5 + $0x478] sm:$0xff]
    %v206 = vld [vmem:[#allocation5 + $0x480] sm:$0xff]
    %v207 = vld [vmem:[#allocation5 + $0x488] sm:$0xff]
    %v208 = vld [vmem:[#allocation5 + $0x490] sm:$0xff]
    %v209 = vld [vmem:[#allocation5 + $0x498] sm:$0xff]
    %v210 = vld [vmem:[#allocation5 + $0x4a0] sm:$0xff]
    %v211 = vld [vmem:[#allocation5 + $0x4a8] sm:$0xff]
    %v212 = vld [vmem:[#allocation5 + $0x4b0] sm:$0xff]
    %v213 = vld [vmem:[#allocation5 + $0x4b8] sm:$0xff]
    %v214 = vld [vmem:[#allocation5 + $0x4c0] sm:$0xff]
    %v215 = vld [vmem:[#allocation5 + $0x4c8] sm:$0xff]
    %v216 = vld [vmem:[#allocation5 + $0x4d0] sm:$0xff]
    %v217 = vld [vmem:[#allocation5 + $0x4d8] sm:$0xff]
    %v218 = vld [vmem:[#allocation5 + $0x4e0] sm:$0xff]
    %v219 = vld [vmem:[#allocation5 + $0x4e8] sm:$0xff]
    %v220 = vld [vmem:[#allocation5 + $0x4f0] sm:$0xff]
    %v221 = vld [vmem:[#allocation5 + $0x4f8] sm:$0xff]
    %v222 = vld [vmem:[#allocation5 + $0x500] sm:$0xff]
    %v223 = vld [vmem:[#allocation5 + $0x508] sm:$0xff]
    %v224 = vld [vmem:[#allocation5 + $0x510] sm:$0xff]
    %v225 = vld [vmem:[#allocation5 + $0x518] sm:$0xff]
    %v226 = vld [vmem:[#allocation5 + $0x520] sm:$0xff]
    %v227 = vld [vmem:[#allocation5 + $0x528] sm:$0xff]
    %v228 = vld [vmem:[#allocation5 + $0x530] sm:$0xff]
    %v229 = vld [vmem:[#allocation5 + $0x538] sm:$0xff]
    %v230 = vld [vmem:[#allocation5 + $0x540] sm:$0xff]
    %v231 = vld [vmem:[#allocation5 + $0x548] sm:$0xff]
    %v232 = vld [vmem:[#allocation5 + $0x550] sm:$0xff]
    %v233 = vld [vmem:[#allocation5 + $0x558] sm:$0xff]
    %v234 = vld [vmem:[#allocation5 + $0x560] sm:$0xff]
    %v235 = vld [vmem:[#allocation5 + $0x568] sm:$0xff]
    %v236 = vld [vmem:[#allocation5 + $0x570] sm:$0xff]
    %v237 = vld [vmem:[#allocation5 + $0x578] sm:$0xff]
    %v238 = vld [vmem:[#allocation5 + $0x580] sm:$0xff]
    %v239 = vld [vmem:[#allocation5 + $0x588] sm:$0xff]
    %v240 = vld [vmem:[#allocation5 + $0x590] sm:$0xff]
    %v241 = vld [vmem:[#allocation5 + $0x598] sm:$0xff]
    %v242 = vld [vmem:[#allocation5 + $0x5a0] sm:$0xff]
    %v243 = vld [vmem:[#allocation5 + $0x5a8] sm:$0xff]
    %v244 = vld [vmem:[#allocation5 + $0x5b0] sm:$0xff]
    %v245 = vld [vmem:[#allocation5 + $0x5b8] sm:$0xff]
    %v246 = vld [vmem:[#allocation5 + $0x5c0] sm:$0xff]
    %v247 = vld [vmem:[#allocation5 + $0x5c8] sm:$0xff]
    %v248 = vld [vmem:[#allocation5 + $0x5d0] sm:$0xff]
    %v249 = vld [vmem:[#allocation5 + $0x5d8] sm:$0xff]
    %v250 = vld [vmem:[#allocation5 + $0x5e0] sm:$0xff]
    %v251 = vld [vmem:[#allocation5 + $0x5e8] sm:$0xff]
    %v252 = vld [vmem:[#allocation5 + $0x5f0] sm:$0xff]
    %v253 = vld [vmem:[#allocation5 + $0x5f8] sm:$0xff]
    %v254 = vld [vmem:[#allocation5 + $0x600] sm:$0xff]
    %v255 = vld [vmem:[#allocation5 + $0x608] sm:$0xff]
    %v256 = vld [vmem:[#allocation5 + $0x610] sm:$0xff]
    %v257 = vld [vmem:[#allocation5 + $0x618] sm:$0xff]
    %v258 = vld [vmem:[#allocation5 + $0x620] sm:$0xff]
    %v259 = vld [vmem:[#allocation5 + $0x628] sm:$0xff]
    %v260 = vld [vmem:[#allocation5 + $0x630] sm:$0xff]
    %v261 = vld [vmem:[#allocation5 + $0x638] sm:$0xff]
    %v262 = vld [vmem:[#allocation5 + $0x640] sm:$0xff]
    %v263 = vld [vmem:[#allocation5 + $0x648] sm:$0xff]
    %v264 = vld [vmem:[#allocation5 + $0x650] sm:$0xff]
    %v265 = vld [vmem:[#allocation5 + $0x658] sm:$0xff]
    %v266 = vld [vmem:[#allocation5 + $0x660] sm:$0xff]
    %v267 = vld [vmem:[#allocation5 + $0x668] sm:$0xff]
    %v268 = vld [vmem:[#allocation5 + $0x670] sm:$0xff]
    %v269 = vld [vmem:[#allocation5 + $0x678] sm:$0xff]
    %v270 = vld [vmem:[#allocation5 + $0x680] sm:$0xff]
    %v271 = vld [vmem:[#allocation5 + $0x688] sm:$0xff]
    %v272 = vld [vmem:[#allocation5 + $0x690] sm:$0xff]
    %v273 = vld [vmem:[#allocation5 + $0x698] sm:$0xff]
    %v274 = vld [vmem:[#allocation5 + $0x6a0] sm:$0xff]
    %v275 = vld [vmem:[#allocation5 + $0x6a8] sm:$0xff]
    %v276 = vld [vmem:[#allocation5 + $0x6b0] sm:$0xff]
    %v277 = vld [vmem:[#allocation5 + $0x6b8] sm:$0xff]
    %v278 = vld [vmem:[#allocation5 + $0x6c0] sm:$0xff]
    %v279 = vld [vmem:[#allocation5 + $0x6c8] sm:$0xff]
    %v280 = vld [vmem:[#allocation5 + $0x6d0] sm:$0xff]
    %v281 = vld [vmem:[#allocation5 + $0x6d8] sm:$0xff]
    %v282 = vld [vmem:[#allocation5 + $0x6e0] sm:$0xff]
    %v283 = vld [vmem:[#allocation5 + $0x6e8] sm:$0xff]
    %v284 = vld [vmem:[#allocation5 + $0x6f0] sm:$0xff]
    %v285 = vld [vmem:[#allocation5 + $0x6f8] sm:$0xff]
    %v286 = vld [vmem:[#allocation5 + $0x700] sm:$0xff]
    %v287 = vld [vmem:[#allocation5 + $0x708] sm:$0xff]
    %v288 = vld [vmem:[#allocation5 + $0x710] sm:$0xff]
    %v289 = vld [vmem:[#allocation5 + $0x718] sm:$0xff]
    %v290 = vld [vmem:[#allocation5 + $0x720] sm:$0xff]
    %v291 = vld [vmem:[#allocation5 + $0x728] sm:$0xff]
    %v292 = vld [vmem:[#allocation5 + $0x730] sm:$0xff]
    %v293 = vld [vmem:[#allocation5 + $0x738] sm:$0xff]
    %v294 = vld [vmem:[#allocation5 + $0x740] sm:$0xff]
    %v295 = vld [vmem:[#allocation5 + $0x748] sm:$0xff]
    %v296 = vld [vmem:[#allocation5 + $0x750] sm:$0xff]
    %v297 = vld [vmem:[#allocation5 + $0x758] sm:$0xff]
    %v298 = vld [vmem:[#allocation5 + $0x760] sm:$0xff]
    %v299 = vld [vmem:[#allocation5 + $0x768] sm:$0xff]
    %v300 = vld [vmem:[#allocation5 + $0x770] sm:$0xff]
    %v301 = vld [vmem:[#allocation5 + $0x778] sm:$0xff]
    %v302 = vld [vmem:[#allocation5 + $0x780] sm:$0xff]
    %v303 = vld [vmem:[#allocation5 + $0x788] sm:$0xff]
    %v304 = vld [vmem:[#allocation5 + $0x790] sm:$0xff]
    %v305 = vld [vmem:[#allocation5 + $0x798] sm:$0xff]
    %v306 = vld [vmem:[#allocation5 + $0x7a0] sm:$0xff]
    %v307 = vld [vmem:[#allocation5 + $0x7a8] sm:$0xff]
    %v308 = vld [vmem:[#allocation5 + $0x7b0] sm:$0xff]
    %v309 = vld [vmem:[#allocation5 + $0x7b8] sm:$0xff]
    %v310 = vld [vmem:[#allocation5 + $0x7c0] sm:$0xff]
    %v311 = vld [vmem:[#allocation5 + $0x7c8] sm:$0xff]
    %v312 = vld [vmem:[#allocation5 + $0x7d0] sm:$0xff]
    %v313 = vld [vmem:[#allocation5 + $0x7d8] sm:$0xff]
    %v314 = vld [vmem:[#allocation5 + $0x7e0] sm:$0xff]
    %v315 = vld [vmem:[#allocation5 + $0x7e8] sm:$0xff]
    %v316 = vld [vmem:[#allocation5 + $0x7f0] sm:$0xff]
    %v317 = vld [vmem:[#allocation5 + $0x7f8] sm:$0xff]
    %v318 = vld [vmem:[#allocation7] sm:$0xf]
    %v320 = vlaneseq
    %v321 = vshrl.u32 %v320, 7
    %v322 = vsub.s32 0, %v321
    %v323 = vrot.slane %v318, %v322
    %v324 = vlaneseq
    %v325 = vshrl.u32 %v324, 7
    %v326 = vsub.s32 1, %v325
    %v327 = vrot.slane %v318, %v326
    %v328 = vlaneseq
    %v329 = vshrl.u32 %v328, 7
    %v330 = vsub.s32 2, %v329
    %v331 = vrot.slane %v318, %v330
    %v332 = vlaneseq
    %v333 = vshrl.u32 %v332, 7
    %v334 = vsub.s32 3, %v333
    %v335 = vrot.slane %v318, %v334
    %340 = vmatprep.subr.mxu0 %v123
    %341 = vmatpush1.msra.mxu0 %v122
    %342 = vmatprep.subr.mxu0 %v119
    %343 = vmatpush1.msra.mxu0 %v118
    %344 = vmatprep.subr.mxu0 %v115
    %345 = vmatpush1.msra.mxu0 %v114
    %346 = vmatprep.subr.mxu0 %v111
    %347 = vmatpush1.msra.mxu0 %v110
    %348 = vmatprep.subr.mxu0 %v107
    %349 = vmatpush1.msra.mxu0 %v106
    %350 = vmatprep.subr.mxu0 %v103
    %351 = vmatpush1.msra.mxu0 %v102
    %352 = vmatprep.subr.mxu0 %v99
    %353 = vmatpush1.msra.mxu0 %v98
    %354 = vmatprep.subr.mxu0 %v95
    %355 = vmatpush1.msra.mxu0 %v94
    %356 = vmatprep.subr.mxu0 %v91
    %357 = vmatpush1.msra.mxu0 %v90
    %358 = vmatprep.subr.mxu0 %v87
    %359 = vmatpush1.msra.mxu0 %v86
    %360 = vmatprep.subr.mxu0 %v83
    %361 = vmatpush1.msra.mxu0 %v82
    %362 = vmatprep.subr.mxu0 %v79
    %363 = vmatpush1.msra.mxu0 %v78
    %364 = vmatprep.subr.mxu0 %v75
    %365 = vmatpush1.msra.mxu0 %v74
    %366 = vmatprep.subr.mxu0 %v71
    %367 = vmatpush1.msra.mxu0 %v70
    %368 = vmatprep.subr.mxu0 %v67
    %369 = vmatpush1.msra.mxu0 %v66
    %370 = vmatprep.subr.mxu0 %v63
    %371 = vmatpush1.msra.mxu0 %v62
    %372 = vmatprep.subr.mxu0 %v187
    %373 = vmatpush2.msra.mxu0 %v186
    %374 = vmatprep.subr.mxu0 %v183
    %375 = vmatpush2.msra.mxu0 %v182
    %376 = vmatprep.subr.mxu0 %v179
    %377 = vmatpush2.msra.mxu0 %v178
    %378 = vmatprep.subr.mxu0 %v175
    %379 = vmatpush2.msra.mxu0 %v174
    %380 = vmatprep.subr.mxu0 %v171
    %381 = vmatpush2.msra.mxu0 %v170
    %382 = vmatprep.subr.mxu0 %v167
    %383 = vmatpush2.msra.mxu0 %v166
    %384 = vmatprep.subr.mxu0 %v163
    %385 = vmatpush2.msra.mxu0 %v162
    %386 = vmatprep.subr.mxu0 %v159
    %387 = vmatpush2.msra.mxu0 %v158
    %388 = vmatprep.subr.mxu0 %v155
    %389 = vmatpush2.msra.mxu0 %v154
    %390 = vmatprep.subr.mxu0 %v151
    %391 = vmatpush2.msra.mxu0 %v150
    %392 = vmatprep.subr.mxu0 %v147
    %393 = vmatpush2.msra.mxu0 %v146
    %394 = vmatprep.subr.mxu0 %v143
    %395 = vmatpush2.msra.mxu0 %v142
    %396 = vmatprep.subr.mxu0 %v139
    %397 = vmatpush2.msra.mxu0 %v138
    %398 = vmatprep.subr.mxu0 %v135
    %399 = vmatpush2.msra.mxu0 %v134
    %400 = vmatprep.subr.mxu0 %v131
    %401 = vmatpush2.msra.mxu0 %v130
    %402 = vmatprep.subr.mxu0 %v127
    %403 = vmatpush2.msra.mxu0 %v126
    %404 = vmatprep.mubr.f32.mxu0 %v55
    %405 = vmatmul.mubr.f32.gmra.mxu0 %v54
    %v406 = vpop.f32.mrf.mxu0
    %v407 = vadd.f32 %v323, %v406
    %v408 = vpop.f32.mrf.mxu0
    %v409 = vadd.f32 %v327, %v408
    %410 = vmatprep.mubr.f32.mxu0 %v59
    %411 = vmatmul.mubr.f32.gmra.mxu0 %v58
    %v412 = vpop.f32.mrf.mxu0
    %v413 = vadd.f32 %v323, %v412
    %v414 = vpop.f32.mrf.mxu0
    %v415 = vadd.f32 %v327, %v414
    %416 = vdwg.mxu0
    %417 = vmatprep.subr.mxu0 %v251
    %418 = vmatpush1.msra.mxu0 %v250
    %419 = vmatprep.subr.mxu0 %v247
    %420 = vmatpush1.msra.mxu0 %v246
    %421 = vmatprep.subr.mxu0 %v243
    %422 = vmatpush1.msra.mxu0 %v242
    %423 = vmatprep.subr.mxu0 %v239
    %424 = vmatpush1.msra.mxu0 %v238
    %425 = vmatprep.subr.mxu0 %v235
    %426 = vmatpush1.msra.mxu0 %v234
    %427 = vmatprep.subr.mxu0 %v231
    %428 = vmatpush1.msra.mxu0 %v230
    %429 = vmatprep.subr.mxu0 %v227
    %430 = vmatpush1.msra.mxu0 %v226
    %431 = vmatprep.subr.mxu0 %v223
    %432 = vmatpush1.msra.mxu0 %v222
    %433 = vmatprep.subr.mxu0 %v219
    %434 = vmatpush1.msra.mxu0 %v218
    %435 = vmatprep.subr.mxu0 %v215
    %436 = vmatpush1.msra.mxu0 %v214
    %437 = vmatprep.subr.mxu0 %v211
    %438 = vmatpush1.msra.mxu0 %v210
    %439 = vmatprep.subr.mxu0 %v207
    %440 = vmatpush1.msra.mxu0 %v206
    %441 = vmatprep.subr.mxu0 %v203
    %442 = vmatpush1.msra.mxu0 %v202
    %443 = vmatprep.subr.mxu0 %v199
    %444 = vmatpush1.msra.mxu0 %v198
    %445 = vmatprep.subr.mxu0 %v195
    %446 = vmatpush1.msra.mxu0 %v194
    %447 = vmatprep.subr.mxu0 %v191
    %448 = vmatpush1.msra.mxu0 %v190
    %449 = vmatprep.subr.mxu0 %v315
    %450 = vmatpush2.msra.mxu0 %v314
    %451 = vmatprep.subr.mxu0 %v311
    %452 = vmatpush2.msra.mxu0 %v310
    %453 = vmatprep.subr.mxu0 %v307
    %454 = vmatpush2.msra.mxu0 %v306
    %455 = vmatprep.subr.mxu0 %v303
    %456 = vmatpush2.msra.mxu0 %v302
    %457 = vmatprep.subr.mxu0 %v299
    %458 = vmatpush2.msra.mxu0 %v298
    %459 = vmatprep.subr.mxu0 %v295
    %460 = vmatpush2.msra.mxu0 %v294
    %461 = vmatprep.subr.mxu0 %v291
    %462 = vmatpush2.msra.mxu0 %v290
    %463 = vmatprep.subr.mxu0 %v287
    %464 = vmatpush2.msra.mxu0 %v286
    %465 = vmatprep.subr.mxu0 %v283
    %466 = vmatpush2.msra.mxu0 %v282
    %467 = vmatprep.subr.mxu0 %v279
    %468 = vmatpush2.msra.mxu0 %v278
    %469 = vmatprep.subr.mxu0 %v275
    %470 = vmatpush2.msra.mxu0 %v274
    %471 = vmatprep.subr.mxu0 %v271
    %472 = vmatpush2.msra.mxu0 %v270
    %473 = vmatprep.subr.mxu0 %v267
    %474 = vmatpush2.msra.mxu0 %v266
    %475 = vmatprep.subr.mxu0 %v263
    %476 = vmatpush2.msra.mxu0 %v262
    %477 = vmatprep.subr.mxu0 %v259
    %478 = vmatpush2.msra.mxu0 %v258
    %479 = vmatprep.subr.mxu0 %v255
    %480 = vmatpush2.msra.mxu0 %v254
    %481 = vmatprep.mubr.f32.mxu0 %v57
    %482 = vmatmul.mubr.f32.gmra.mxu0 %v56
    %v483 = vpop.f32.mrf.mxu0
    %v484 = vadd.f32 %v407, %v483
    %v485 = vpop.f32.mrf.mxu0
    %v486 = vadd.f32 %v409, %v485
    %487 = vmatprep.mubr.f32.mxu0 %v61
    %488 = vmatmul.mubr.f32.gmra.mxu0 %v60
    %v489 = vpop.f32.mrf.mxu0
    %v490 = vadd.f32 %v413, %v489
    %v491 = vpop.f32.mrf.mxu0
    %v492 = vadd.f32 %v415, %v491
    %493 = vdwg.mxu0
    %494 = vmatprep.subr.mxu0 %v125
    %495 = vmatpush1.msra.mxu0 %v124
    %496 = vmatprep.subr.mxu0 %v121
    %497 = vmatpush1.msra.mxu0 %v120
    %498 = vmatprep.subr.mxu0 %v117
    %499 = vmatpush1.msra.mxu0 %v116
    %500 = vmatprep.subr.mxu0 %v113
    %501 = vmatpush1.msra.mxu0 %v112
    %502 = vmatprep.subr.mxu0 %v109
    %503 = vmatpush1.msra.mxu0 %v108
    %504 = vmatprep.subr.mxu0 %v105
    %505 = vmatpush1.msra.mxu0 %v104
    %506 = vmatprep.subr.mxu0 %v101
    %507 = vmatpush1.msra.mxu0 %v100
    %508 = vmatprep.subr.mxu0 %v97
    %509 = vmatpush1.msra.mxu0 %v96
    %510 = vmatprep.subr.mxu0 %v93
    %511 = vmatpush1.msra.mxu0 %v92
    %512 = vmatprep.subr.mxu0 %v89
    %513 = vmatpush1.msra.mxu0 %v88
    %514 = vmatprep.subr.mxu0 %v85
    %515 = vmatpush1.msra.mxu0 %v84
    %516 = vmatprep.subr.mxu0 %v81
    %517 = vmatpush1.msra.mxu0 %v80
    %518 = vmatprep.subr.mxu0 %v77
    %519 = vmatpush1.msra.mxu0 %v76
    %520 = vmatprep.subr.mxu0 %v73
    %521 = vmatpush1.msra.mxu0 %v72
    %522 = vmatprep.subr.mxu0 %v69
    %523 = vmatpush1.msra.mxu0 %v68
    %524 = vmatprep.subr.mxu0 %v65
    %525 = vmatpush1.msra.mxu0 %v64
    %526 = vmatprep.subr.mxu0 %v189
    %527 = vmatpush2.msra.mxu0 %v188
    %528 = vmatprep.subr.mxu0 %v185
    %529 = vmatpush2.msra.mxu0 %v184
    %530 = vmatprep.subr.mxu0 %v181
    %531 = vmatpush2.msra.mxu0 %v180
    %532 = vmatprep.subr.mxu0 %v177
    %533 = vmatpush2.msra.mxu0 %v176
    %534 = vmatprep.subr.mxu0 %v173
    %535 = vmatpush2.msra.mxu0 %v172
    %536 = vmatprep.subr.mxu0 %v169
    %537 = vmatpush2.msra.mxu0 %v168
    %538 = vmatprep.subr.mxu0 %v165
    %539 = vmatpush2.msra.mxu0 %v164
    %540 = vmatprep.subr.mxu0 %v161
    %541 = vmatpush2.msra.mxu0 %v160
    %542 = vmatprep.subr.mxu0 %v157
    %543 = vmatpush2.msra.mxu0 %v156
    %544 = vmatprep.subr.mxu0 %v153
    %545 = vmatpush2.msra.mxu0 %v152
    %546 = vmatprep.subr.mxu0 %v149
    %547 = vmatpush2.msra.mxu0 %v148
    %548 = vmatprep.subr.mxu0 %v145
    %549 = vmatpush2.msra.mxu0 %v144
    %550 = vmatprep.subr.mxu0 %v141
    %551 = vmatpush2.msra.mxu0 %v140
    %552 = vmatprep.subr.mxu0 %v137
    %553 = vmatpush2.msra.mxu0 %v136
    %554 = vmatprep.subr.mxu0 %v133
    %555 = vmatpush2.msra.mxu0 %v132
    %556 = vmatprep.subr.mxu0 %v129
    %557 = vmatpush2.msra.mxu0 %v128
    %558 = vmatprep.mubr.f32.mxu0 %v55
    %559 = vmatmul.mubr.f32.gmra.mxu0 %v54
    %v560 = vpop.f32.mrf.mxu0
    %v561 = vadd.f32 %v331, %v560
    %v562 = vpop.f32.mrf.mxu0
    %v563 = vadd.f32 %v335, %v562
    %564 = vmatprep.mubr.f32.mxu0 %v59
    %565 = vmatmul.mubr.f32.gmra.mxu0 %v58
    %v566 = vpop.f32.mrf.mxu0
    %v567 = vadd.f32 %v331, %v566
    %v568 = vpop.f32.mrf.mxu0
    %v569 = vadd.f32 %v335, %v568
    %570 = vdwg.mxu0
    %571 = vmatprep.subr.mxu0 %v253
    %572 = vmatpush1.msra.mxu0 %v252
    %573 = vmatprep.subr.mxu0 %v249
    %574 = vmatpush1.msra.mxu0 %v248
    %575 = vmatprep.subr.mxu0 %v245
    %576 = vmatpush1.msra.mxu0 %v244
    %577 = vmatprep.subr.mxu0 %v241
    %578 = vmatpush1.msra.mxu0 %v240
    %579 = vmatprep.subr.mxu0 %v237
    %580 = vmatpush1.msra.mxu0 %v236
    %581 = vmatprep.subr.mxu0 %v233
    %582 = vmatpush1.msra.mxu0 %v232
    %583 = vmatprep.subr.mxu0 %v229
    %584 = vmatpush1.msra.mxu0 %v228
    %585 = vmatprep.subr.mxu0 %v225
    %586 = vmatpush1.msra.mxu0 %v224
    %587 = vmatprep.subr.mxu0 %v221
    %588 = vmatpush1.msra.mxu0 %v220
    %589 = vmatprep.subr.mxu0 %v217
    %590 = vmatpush1.msra.mxu0 %v216
    %591 = vmatprep.subr.mxu0 %v213
    %592 = vmatpush1.msra.mxu0 %v212
    %593 = vmatprep.subr.mxu0 %v209
    %594 = vmatpush1.msra.mxu0 %v208
    %595 = vmatprep.subr.mxu0 %v205
    %596 = vmatpush1.msra.mxu0 %v204
    %597 = vmatprep.subr.mxu0 %v201
    %598 = vmatpush1.msra.mxu0 %v200
    %599 = vmatprep.subr.mxu0 %v197
    %600 = vmatpush1.msra.mxu0 %v196
    %601 = vmatprep.subr.mxu0 %v193
    %602 = vmatpush1.msra.mxu0 %v192
    %603 = vmatprep.subr.mxu0 %v317
    %604 = vmatpush2.msra.mxu0 %v316
    %605 = vmatprep.subr.mxu0 %v313
    %606 = vmatpush2.msra.mxu0 %v312
    %607 = vmatprep.subr.mxu0 %v309
    %608 = vmatpush2.msra.mxu0 %v308
    %609 = vmatprep.subr.mxu0 %v305
    %610 = vmatpush2.msra.mxu0 %v304
    %611 = vmatprep.subr.mxu0 %v301
    %612 = vmatpush2.msra.mxu0 %v300
    %613 = vmatprep.subr.mxu0 %v297
    %614 = vmatpush2.msra.mxu0 %v296
    %615 = vmatprep.subr.mxu0 %v293
    %616 = vmatpush2.msra.mxu0 %v292
    %617 = vmatprep.subr.mxu0 %v289
    %618 = vmatpush2.msra.mxu0 %v288
    %619 = vmatprep.subr.mxu0 %v285
    %620 = vmatpush2.msra.mxu0 %v284
    %621 = vmatprep.subr.mxu0 %v281
    %622 = vmatpush2.msra.mxu0 %v280
    %623 = vmatprep.subr.mxu0 %v277
    %624 = vmatpush2.msra.mxu0 %v276
    %625 = vmatprep.subr.mxu0 %v273
    %626 = vmatpush2.msra.mxu0 %v272
    %627 = vmatprep.subr.mxu0 %v269
    %628 = vmatpush2.msra.mxu0 %v268
    %629 = vmatprep.subr.mxu0 %v265
    %630 = vmatpush2.msra.mxu0 %v264
    %631 = vmatprep.subr.mxu0 %v261
    %632 = vmatpush2.msra.mxu0 %v260
    %633 = vmatprep.subr.mxu0 %v257
    %634 = vmatpush2.msra.mxu0 %v256
    %635 = vmatprep.mubr.f32.mxu0 %v57
    %636 = vmatmul.mubr.f32.gmra.mxu0 %v56
    %v637 = vpop.f32.mrf.mxu0
    %v638 = vadd.f32 %v561, %v637
    %v639 = vpop.f32.mrf.mxu0
    %v640 = vadd.f32 %v563, %v639
    %641 = vmatprep.mubr.f32.mxu0 %v61
    %642 = vmatmul.mubr.f32.gmra.mxu0 %v60
    %v643 = vpop.f32.mrf.mxu0
    %v644 = vadd.f32 %v567, %v643
    %v645 = vpop.f32.mrf.mxu0
    %v646 = vadd.f32 %v569, %v645
    %647 = vdwg.mxu0
    %v648 = vadd.f32 %v484, %v54
    %v649 = vadd.f32 %v486, %v55
    %v650 = vadd.f32 %v638, %v56
    %v651 = vadd.f32 %v640, %v57
    %v652 = vadd.f32 %v490, %v58
    %v653 = vadd.f32 %v492, %v59
    %v654 = vadd.f32 %v644, %v60
    %v655 = vadd.f32 %v646, %v61
    %v656 = vmax.f32 %v648, 0.0
    %v657 = vmax.f32 %v649, 0.0
    %v658 = vmax.f32 %v650, 0.0
    %v659 = vmax.f32 %v651, 0.0
    %v660 = vmax.f32 %v652, 0.0
    %v661 = vmax.f32 %v653, 0.0
    %v662 = vmax.f32 %v654, 0.0
    %v663 = vmax.f32 %v655, 0.0
    %664 = vst [vmem:[#allocation8] sm:$0xff] %v656
    %665 = vst [vmem:[#allocation8 + $0x8] sm:$0xff] %v657
    %666 = vst [vmem:[#allocation8 + $0x10] sm:$0xff] %v658
    %667 = vst [vmem:[#allocation8 + $0x18] sm:$0xff] %v659
    %668 = vst [vmem:[#allocation8 + $0x20] sm:$0xff] %v660
    %669 = vst [vmem:[#allocation8 + $0x28] sm:$0xff] %v661
    %670 = vst [vmem:[#allocation8 + $0x30] sm:$0xff] %v662
    %671 = vst [vmem:[#allocation8 + $0x38] sm:$0xff] %v663
    // Predicated region
    $region26: #{tpu_custom_call.1} parent=1 // pred_check
      _
    $region27: #{tpu_custom_call.1} parent=1 // pred_check_branch
      %673 = sbr.rel (0) target = $region29
    $region28: #{tpu_custom_call.1} parent=1 // pred_region
      %s675 = ssub.s32 1024, 1024
      %676 = vsyncadd [#allocation4], %s675
      %s677 = sshll.u32 [#allocation8], 4
      %s678 = int_to_ptr.vmem [resolvable:$true] %s677
      %683 = dma.vmem_to_hbm [thread:$0]  %s678, 1024, %s3, [#allocation4], 512, 512, 32
    $region29: #{tpu_custom_call.1} parent=1 // pred_fallthru
      _
    // Predicated region
    $region30: #{tpu_custom_call.1} parent=1 // pred_check
      _
    $region31: #{tpu_custom_call.1} parent=1 // pred_check_branch
      %685 = sbr.rel (0) target = $region33
    $region32: #{tpu_custom_call.1} parent=1 // pred_region
      %686 = dma.done [#allocation4], 1024
    $region33: #{tpu_custom_call.1} parent=1 // pred_fallthru
      _
    %687 = vsyncpa [#allocation3], 1
    %688 = vsyncpa [#allocation6], 1
    %689 = vsyncpa [#allocation4], 1

</llo_original>
